<compile_context>
chip_gen: v6e
topology: v6e:2x2x1
jax: 0.10.0
libtpu: 0.0.40
codegen_flags: <defaults>
</compile_context>

<pallas_src>
import functools
import math

import jax
import jax.numpy as jnp
from jax import lax
from jax.experimental import pallas as pl
from jax.experimental.pallas import tpu as pltpu

_INV_SQRT2 = 1.0 / math.sqrt(2.0)


def _round_up(x, m):
    return ((x + m - 1) // m) * m


@functools.lru_cache(maxsize=None)
def _vmem_budget_bytes():
    """~75% of one TensorCore's VMEM, leaving headroom for compiler-internal scratch.

    v5e/v6e (128 MiB) -> 96 MiB, v7x (64 MiB) -> 48 MiB.  Conservative 48 MiB fallback
    (safe on every generation) if the hardware query is unavailable.
    """
    cap = 64 * 1024 * 1024
    try:
        cap = int(pltpu.get_tpu_info().vmem_capacity_bytes)
    except Exception:
        pass
    budget = (cap * 3) // 4
    return int(min(max(budget, 32 * 1024 * 1024), 100 * 1024 * 1024))


def _row_align(dtype):
    # Sublane packing: f32 packs 8 rows per tile, bf16 16, int8/fp8 32.
    return max(8, 32 // jnp.dtype(dtype).itemsize)


def _footprint_bytes(tm, tf, Cp, in_bytes, out_bytes, *, fused):
    """Rough per-step VMEM working set (double-buffered inputs/outputs + temps)."""
    b = 0
    b += 2 * tm * Cp * in_bytes          # x row tile
    b += 2 * Cp * tf * in_bytes          # W1 tile
    b += 2 * tf * Cp * in_bytes          # W2 tile
    b += 2 * (tf + Cp) * 4               # biases (f32)
    b += 2 * tm * Cp * out_bytes         # output tile
    b += tm * tf * 4                     # materialized f32 hidden / GELU temp
    if not fused:
        b += tm * Cp * 4                 # f32 accumulator scratch
    return b


def _gelu_exact(h):
    # Exact GELU: 0.5 * h * (1 + erf(h / sqrt(2)))  (matches torch.nn.GELU default).
    return 0.5 * h * (1.0 + lax.erf(h * _INV_SQRT2))


def _ffn_kernel_fused(x_ref, w1_ref, b1_ref, w2_ref, b2_ref, o_ref):
    # Full W1/W2 resident: one matmul -> GELU -> matmul per row tile, no k bookkeeping.
    h = jnp.dot(x_ref[...], w1_ref[...], preferred_element_type=jnp.float32)
    h = _gelu_exact(h + b1_ref[...].astype(jnp.float32))
    y = jnp.dot(h.astype(w2_ref.dtype), w2_ref[...], preferred_element_type=jnp.float32)
    # TODO(synk): Dropout(p=0.1) is identity in eval mode; training-mode dropout would
    # use pltpu.prng_seed + pltpu.prng_random_bits here.
    o_ref[...] = (y + b2_ref[...].astype(jnp.float32)).astype(o_ref.dtype)


def _ffn_kernel_ktiled(x_ref, w1_ref, b1_ref, w2_ref, b2_ref, o_ref, acc_ref):
    # Grid = (row tiles, F tiles); F is the reduction axis into the f32 accumulator.
    k = pl.program_id(1)

    @pl.when(k == 0)
    def _():
        acc_ref[...] = jnp.zeros_like(acc_ref)

    h = jnp.dot(x_ref[...], w1_ref[...], preferred_element_type=jnp.float32)
    h = _gelu_exact(h + b1_ref[...].astype(jnp.float32))
    # GELU is elementwise over F, so per-F-tile GELU + partial second matmul is exact.
    acc_ref[...] += jnp.dot(h.astype(w2_ref.dtype), w2_ref[...],
                            preferred_element_type=jnp.float32)

    @pl.when(k == pl.num_programs(1) - 1)
    def _():
        # TODO(synk): eval-mode dropout is identity; see fused kernel comment.
        o_ref[...] = (acc_ref[...] + b2_ref[...].astype(jnp.float32)).astype(o_ref.dtype)


@functools.partial(jax.jit,
                   static_argnames=("compute_dtype", "tm", "tf", "force_reduction"))
def position_wise_ffn(x, w1, b1, w2, b2, *, compute_dtype=jnp.bfloat16,
                      tm=None, tf=None, force_reduction=False):
    """x: [B, T, C]; w1: [C, F]; b1: [F]; w2: [F, C]; b2: [C]."""
    B, T, C = x.shape
    F = w1.shape[1]
    M = B * T

    in_bytes = jnp.dtype(compute_dtype).itemsize
    out_bytes = jnp.dtype(x.dtype).itemsize
    budget = _vmem_budget_bytes()
    row_align = _row_align(compute_dtype)

    Cp = _round_up(C, 128)
    Fp0 = _round_up(F, 128)

    # Row tile: per grid step we read ~2*Cp*tf weight elements and do 4*tm*Cp*tf flops,
    # so arithmetic intensity ~ tm flops / weight byte.  Target 1024 rows on 128-MiB
    # parts (v6e ridge ~680 fl/B) and 512 on 64-MiB parts (v7x ridge ~310).
    if tm is None:
        tm_target = 1024 if budget >= 80 * 1024 * 1024 else 512
        tm_sel = min(tm_target, _round_up(M, row_align))
    else:
        tm_sel = min(int(tm), _round_up(M, row_align))

    # Fused path when the whole (padded) W1/W2 + temps fit the VMEM budget.
    fused = (not force_reduction and tf is None and
             _footprint_bytes(tm_sel, Fp0, Cp, in_bytes, out_bytes, fused=True) <= budget)

    if fused:
        tf_sel, Fp = Fp0, Fp0
    else:
        tf_sel = min(int(tf) if tf is not None else 512, Fp0)
        tf_sel = max(128, _round_up(tf_sel, 128))
        # Shrink the F tile, then the row tile, until the working set fits VMEM.
        # (For very large C on v7x this is what keeps the untiled Cp axis affordable.)
        while (_footprint_bytes(tm_sel, tf_sel, Cp, in_bytes, out_bytes, fused=False)
               > budget and tf_sel > 128):
            tf_sel = max(128, tf_sel - 128)
        while (_footprint_bytes(tm_sel, tf_sel, Cp, in_bytes, out_bytes, fused=False)
               > budget and tm_sel > row_align):
            tm_sel = max(row_align, _round_up(tm_sel // 2, row_align))
        Fp = _round_up(F, tf_sel)

    Mp = _round_up(M, tm_sel)

    # Pad / cast only when needed.  Zero padding is exact: padded input cols hit zero
    # weight rows, padded hidden units see b1=0 -> GELU(0)=0 -> zero W2 rows, padded
    # output cols are sliced off.
    x2d = x.reshape(M, C).astype(compute_dtype)
    if (Mp, Cp) != (M, C):
        x2d = jnp.pad(x2d, ((0, Mp - M), (0, Cp - C)))
    w1c = w1.astype(compute_dtype)
    if (Cp, Fp) != (C, F):
        w1c = jnp.pad(w1c, ((0, Cp - C), (0, Fp - F)))
    w2c = w2.astype(compute_dtype)
    if (Fp, Cp) != (F, C):
        w2c = jnp.pad(w2c, ((0, Fp - F), (0, Cp - C)))
    b1p = b1.astype(jnp.float32)
    if Fp != F:
        b1p = jnp.pad(b1p, (0, Fp - F))
    b1p = b1p.reshape(1, Fp)
    b2p = b2.astype(jnp.float32)
    if Cp != C:
        b2p = jnp.pad(b2p, (0, Cp - C))
    b2p = b2p.reshape(1, Cp)

    n_row_tiles = Mp // tm_sel
    cost = pl.CostEstimate(
        flops=int(4 * Mp * Cp * Fp),
        transcendentals=int(Mp * Fp),
        bytes_accessed=int(Mp * Cp * (in_bytes + out_bytes)
                           + n_row_tiles * 2 * Cp * Fp * in_bytes),
    )
    compiler_params_kwargs = dict(vmem_limit_bytes=int(budget))

    if fused:
        out2d = pl.pallas_call(
            _ffn_kernel_fused,
            out_shape=jax.ShapeDtypeStruct((Mp, Cp), x.dtype),
            grid_spec=pltpu.PrefetchScalarGridSpec(
                num_scalar_prefetch=0,
                grid=(n_row_tiles,),
                in_specs=[
                    pl.BlockSpec((tm_sel, Cp), lambda i: (i, 0)),   # x row tile
                    pl.BlockSpec((Cp, Fp), lambda i: (0, 0)),       # full W1
                    pl.BlockSpec((1, Fp), lambda i: (0, 0)),        # b1
                    pl.BlockSpec((Fp, Cp), lambda i: (0, 0)),       # full W2
                    pl.BlockSpec((1, Cp), lambda i: (0, 0)),        # b2
                ],
                out_specs=pl.BlockSpec((tm_sel, Cp), lambda i: (i, 0)),
            ),
            compiler_params=pltpu.CompilerParams(
                dimension_semantics=("parallel",), **compiler_params_kwargs),
            cost_estimate=cost,
        )(x2d, w1c, b1p, w2c, b2p)
    else:
        out2d = pl.pallas_call(
            _ffn_kernel_ktiled,
            out_shape=jax.ShapeDtypeStruct((Mp, Cp), x.dtype),
            grid_spec=pltpu.PrefetchScalarGridSpec(
                num_scalar_prefetch=0,
                grid=(n_row_tiles, Fp // tf_sel),
                in_specs=[
                    pl.BlockSpec((tm_sel, Cp), lambda i, k: (i, 0)),   # x row tile
                    pl.BlockSpec((Cp, tf_sel), lambda i, k: (0, k)),   # W1 F-tile
                    pl.BlockSpec((1, tf_sel), lambda i, k: (0, k)),    # b1 F-tile
                    pl.BlockSpec((tf_sel, Cp), lambda i, k: (k, 0)),   # W2 F-tile
                    pl.BlockSpec((1, Cp), lambda i, k: (0, 0)),        # b2 (constant)
                ],
                out_specs=pl.BlockSpec((tm_sel, Cp), lambda i, k: (i, 0)),
                scratch_shapes=[pltpu.VMEM((tm_sel, Cp), jnp.float32)],
            ),
            compiler_params=pltpu.CompilerParams(
                # Row axis is megacore-shardable; F axis reduces into the resident acc.
                dimension_semantics=("parallel", "arbitrary"), **compiler_params_kwargs),
            cost_estimate=cost,
        )(x2d, w1c, b1p, w2c, b2p)

    return out2d[:M, :C].reshape(B, T, C)


def _init_linear_params(key, fan_in, fan_out, dtype=jnp.float32):
    # Mirrors torch.nn.Linear default init: U(-1/sqrt(fan_in), 1/sqrt(fan_in)).
    kw, kb = jax.random.split(key)
    bound = 1.0 / math.sqrt(fan_in)
    # PyTorch stores weight as [out, in]; we keep [in, out] for x @ W.
    w = jax.random.uniform(kw, (fan_in, fan_out), dtype, -bound, bound)
    b = jax.random.uniform(kb, (fan_out,), dtype, -bound, bound)
    return w, b


def _reference_ffn(x, w1, b1, w2, b2):
    h = jnp.einsum("btc,cf->btf", x, w1, preferred_element_type=jnp.float32) + b1
    h = 0.5 * h * (1.0 + lax.erf(h * _INV_SQRT2))
    return jnp.einsum("btf,fc->btc", h, w2, preferred_element_type=jnp.float32) + b2


if __name__ == "__main__":
    # Small shapes consistent with the module: batch=2, seq=8, n_embd=32, ff_dim=128.
    B, T, n_embd, ff_dim = 2, 8, 32, 128

    key = jax.random.PRNGKey(0)
    kx, k1, k2 = jax.random.split(key, 3)

    x = jax.random.normal(kx, (B, T, n_embd), jnp.float32)
    w1, b1 = _init_linear_params(k1, n_embd, ff_dim)
    w2, b2 = _init_linear_params(k2, ff_dim, n_embd)

    out = jax.block_until_ready(position_wise_ffn(x, w1, b1, w2, b2))
    ref = _reference_ffn(x, w1, b1, w2, b2)
    assert out.shape == (B, T, n_embd)
    # bf16 operands / f32 accumulation -> loose-ish tolerance vs the f32 reference.
    assert jnp.allclose(out, ref, atol=3e-2, rtol=3e-2), "mismatch vs reference (fused)"

    # Also exercise the F-reduction (k-tiled) path with two F tiles.
    k3, k4 = jax.random.split(k2)
    w1b, b1b = _init_linear_params(k3, n_embd, 256)
    w2b, b2b = _init_linear_params(k4, 256, n_embd)
    out2 = jax.block_until_ready(
        position_wise_ffn(x, w1b, b1b, w2b, b2b, force_reduction=True, tf=128))
    ref2 = _reference_ffn(x, w1b, b1b, w2b, b2b)
    assert jnp.allclose(out2, ref2, atol=3e-2, rtol=3e-2), "mismatch vs reference (k-tiled)"

    print("KERNEL_OK")
</pallas_src>

<mosaic_0001>
module attributes {stable_mosaic.version = 11 : i64} {
  func.func @_ffn_kernel_fused(%arg0: i32, %arg1: memref<16x128xbf16, #tpu.memory_space<vmem>>, %arg2: memref<128x128xbf16, #tpu.memory_space<vmem>>, %arg3: memref<1x128xf32, #tpu.memory_space<vmem>>, %arg4: memref<128x128xbf16, #tpu.memory_space<vmem>>, %arg5: memref<1x128xf32, #tpu.memory_space<vmem>>, %arg6: memref<16x128xf32, #tpu.memory_space<vmem>>) attributes {dimension_semantics = [#tpu.dimension_semantics<parallel>], iteration_bounds = array<i64: 1>, scalar_prefetch = 0 : i64, scratch_operands = 0 : i64, tpu.core_type = #tpu.core_type<tc>, window_params = [{transform_indices = @transform_0, window_bounds = array<i64: 16, 128>}, {pipeline_mode = #tpu.pipeline_mode<synchronous>, transform_indices = @transform_1, window_bounds = array<i64: 128, 128>}, {pipeline_mode = #tpu.pipeline_mode<synchronous>, transform_indices = @transform_2, window_bounds = array<i64: 1, 128>}, {pipeline_mode = #tpu.pipeline_mode<synchronous>, transform_indices = @transform_3, window_bounds = array<i64: 128, 128>}, {pipeline_mode = #tpu.pipeline_mode<synchronous>, transform_indices = @transform_4, window_bounds = array<i64: 1, 128>}, {transform_indices = @transform_5, window_bounds = array<i64: 16, 128>}]} {
    %c0 = arith.constant 0 : index
    %c0_0 = arith.constant 0 : index
    %0 = vector.load %arg1[%c0, %c0_0] : memref<16x128xbf16, #tpu.memory_space<vmem>>, vector<16x128xbf16>
    %c0_1 = arith.constant 0 : index
    %c0_2 = arith.constant 0 : index
    %1 = vector.load %arg2[%c0_1, %c0_2] : memref<128x128xbf16, #tpu.memory_space<vmem>>, vector<128x128xbf16>
    %cst = arith.constant dense<0.000000e+00> : vector<16x128xf32>
    %2 = tpu.matmul %0, %1, %cst {dimension_numbers = #tpu.dot_dimension_numbers<[1], [0], [0], [1], [0, 0, 1, 1], [], []>} : vector<16x128xbf16>, vector<128x128xbf16>, vector<16x128xf32> -> vector<16x128xf32>
    %c0_3 = arith.constant 0 : index
    %c0_4 = arith.constant 0 : index
    %3 = vector.load %arg3[%c0_3, %c0_4] : memref<1x128xf32, #tpu.memory_space<vmem>>, vector<1x128xf32>
    %4 = vector.broadcast %3 : vector<1x128xf32> to vector<16x128xf32>
    %5 = arith.addf %2, %4 : vector<16x128xf32>
    %cst_5 = arith.constant 5.000000e-01 : f32
    %6 = vector.broadcast %cst_5 : f32 to vector<16x128xf32>
    %7 = arith.mulf %6, %5 : vector<16x128xf32>
    %cst_6 = arith.constant 0.707106769 : f32
    %8 = vector.broadcast %cst_6 : f32 to vector<16x128xf32>
    %9 = arith.mulf %5, %8 : vector<16x128xf32>
    %10 = math.erf %9 : vector<16x128xf32>
    %cst_7 = arith.constant 1.000000e+00 : f32
    %11 = vector.broadcast %cst_7 : f32 to vector<16x128xf32>
    %12 = arith.addf %11, %10 : vector<16x128xf32>
    %13 = arith.mulf %7, %12 : vector<16x128xf32>
    %14 = arith.truncf %13 : vector<16x128xf32> to vector<16x128xbf16>
    %c0_8 = arith.constant 0 : index
    %c0_9 = arith.constant 0 : index
    %15 = vector.load %arg4[%c0_8, %c0_9] : memref<128x128xbf16, #tpu.memory_space<vmem>>, vector<128x128xbf16>
    %cst_10 = arith.constant dense<0.000000e+00> : vector<16x128xf32>
    %16 = tpu.matmul %14, %15, %cst_10 {dimension_numbers = #tpu.dot_dimension_numbers<[1], [0], [0], [1], [0, 0, 1, 1], [], []>} : vector<16x128xbf16>, vector<128x128xbf16>, vector<16x128xf32> -> vector<16x128xf32>
    %c0_11 = arith.constant 0 : index
    %c0_12 = arith.constant 0 : index
    %17 = vector.load %arg5[%c0_11, %c0_12] : memref<1x128xf32, #tpu.memory_space<vmem>>, vector<1x128xf32>
    %18 = vector.broadcast %17 : vector<1x128xf32> to vector<16x128xf32>
    %19 = arith.addf %16, %18 : vector<16x128xf32>
    %c0_13 = arith.constant 0 : index
    %c0_14 = arith.constant 0 : index
    %20 = vector.load %arg6[%c0_13, %c0_14] : memref<16x128xf32, #tpu.memory_space<vmem>>, vector<16x128xf32>
    tpu.vector_store %arg6[%c0_13, %c0_14], %19 {strides = array<i32>} : memref<16x128xf32, #tpu.memory_space<vmem>>, vector<16x128xf32>,
    return
  }
  func.func @transform_0(%arg0: i32) -> (i32, i32) {
    %c0_i32 = arith.constant 0 : i32
    %c0_i32_0 = arith.constant 0 : i32
    return %arg0, %c0_i32 : i32, i32
  }
  func.func @transform_1(%arg0: i32) -> (i32, i32) {
    %c0_i32 = arith.constant 0 : i32
    %c0_i32_0 = arith.constant 0 : i32
    %c0_i32_1 = arith.constant 0 : i32
    return %c0_i32, %c0_i32_0 : i32, i32
  }
  func.func @transform_2(%arg0: i32) -> (i32, i32) {
    %c0_i32 = arith.constant 0 : i32
    %c0_i32_0 = arith.constant 0 : i32
    %c0_i32_1 = arith.constant 0 : i32
    return %c0_i32, %c0_i32_0 : i32, i32
  }
  func.func @transform_3(%arg0: i32) -> (i32, i32) {
    %c0_i32 = arith.constant 0 : i32
    %c0_i32_0 = arith.constant 0 : i32
    %c0_i32_1 = arith.constant 0 : i32
    return %c0_i32, %c0_i32_0 : i32, i32
  }
  func.func @transform_4(%arg0: i32) -> (i32, i32) {
    %c0_i32 = arith.constant 0 : i32
    %c0_i32_0 = arith.constant 0 : i32
    %c0_i32_1 = arith.constant 0 : i32
    return %c0_i32, %c0_i32_0 : i32, i32
  }
  func.func @transform_5(%arg0: i32) -> (i32, i32) {
    %c0_i32 = arith.constant 0 : i32
    %c0_i32_0 = arith.constant 0 : i32
    return %arg0, %c0_i32 : i32, i32
  }
}

</mosaic_0001>

<llo_original>
// kernel: position_wise_ffn.1
$region0: #{position_wise_ffn.1}
  #allocation0 [shape = 'u32[]', space=smem, size = 0x4, offset = 0x4, fixed_abs, tag = 'smem constant byte address 0x4 - core index']
  #allocation1 [shape = 'u32[144,128]{1,0:T(1,128)}', space=vmem, size = 0x12000, scoped, tag = 'internal scratch']
  %s0 = inlined_call_operand.vmem [shape: bf16[16,128], index: 0, kind: input, shape index: {}]
  %s1 = inlined_call_operand.vmem [shape: bf16[128,128], index: 1, kind: input, shape index: {}]
  %s2 = inlined_call_operand.vmem [shape: f32[1,128], index: 2, kind: input, shape index: {}]
  %s3 = inlined_call_operand.vmem [shape: bf16[128,128], index: 3, kind: input, shape index: {}]
  %s4 = inlined_call_operand.vmem [shape: f32[1,128], index: 4, kind: input, shape index: {}]
  %s5 = inlined_call_operand.vmem [shape: f32[16,128], index: 5, kind: output, shape index: {}]
  %s6 = sld [smem:[#allocation0]]
  $region30: #{position_wise_ffn.1} parent=0
    _
  %s8 = ssub.s32 1, %s6
  %s9 = scalar_select 0, %s8, %s6
  // Predicated region
  $region2: #{position_wise_ffn.1} parent=0 // pred_check
    _
  $region3: #{position_wise_ffn.1} parent=0 // pred_check_branch
    %11 = sbr.rel (0) target = $region5
  $region4: #{position_wise_ffn.1} parent=0 // pred_region
    _
  $region5: #{position_wise_ffn.1} parent=0 // pred_fallthru
    _
  // Predicated region
  $region6: #{position_wise_ffn.1} parent=0 // pred_check
    _
  $region7: #{position_wise_ffn.1} parent=0 // pred_check_branch
    %13 = sbr.rel (0) target = $region9
  $region8: #{position_wise_ffn.1} parent=0 // pred_region
    _
  $region9: #{position_wise_ffn.1} parent=0 // pred_fallthru
    _
  // Predicated region
  $region10: #{position_wise_ffn.1} parent=0 // pred_check
    _
  $region11: #{position_wise_ffn.1} parent=0 // pred_check_branch
    %15 = sbr.rel (0) target = $region13
  $region12: #{position_wise_ffn.1} parent=0 // pred_region
    _
  $region13: #{position_wise_ffn.1} parent=0 // pred_fallthru
    _
  // Predicated region
  $region14: #{position_wise_ffn.1} parent=0 // pred_check
    _
  $region15: #{position_wise_ffn.1} parent=0 // pred_check_branch
    %17 = sbr.rel (0) target = $region17
  $region16: #{position_wise_ffn.1} parent=0 // pred_region
    _
  $region17: #{position_wise_ffn.1} parent=0 // pred_fallthru
    _
  // Predicated region
  $region18: #{position_wise_ffn.1} parent=0 // pred_check
    _
  $region19: #{position_wise_ffn.1} parent=0 // pred_check_branch
    %19 = sbr.rel (0) target = $region21
  $region20: #{position_wise_ffn.1} parent=0 // pred_region
    _
  $region21: #{position_wise_ffn.1} parent=0 // pred_fallthru
    _
  %v21 = vld [vmem:[%s0] sm:$0xf]
  %v22 = vld [vmem:[%s0 + $0x4] sm:$0xf]
  %v23 = vld [vmem:[%s1] sm:$0xf]
  %v24 = vld [vmem:[%s1 + $0x4] sm:$0xf]
  %v25 = vld [vmem:[%s1 + $0x8] sm:$0xf]
  %v26 = vld [vmem:[%s1 + $0xc] sm:$0xf]
  %v27 = vld [vmem:[%s1 + $0x10] sm:$0xf]
  %v28 = vld [vmem:[%s1 + $0x14] sm:$0xf]
  %v29 = vld [vmem:[%s1 + $0x18] sm:$0xf]
  %v30 = vld [vmem:[%s1 + $0x1c] sm:$0xf]
  %v31 = vld [vmem:[%s1 + $0x20] sm:$0xf]
  %v32 = vld [vmem:[%s1 + $0x24] sm:$0xf]
  %v33 = vld [vmem:[%s1 + $0x28] sm:$0xf]
  %v34 = vld [vmem:[%s1 + $0x2c] sm:$0xf]
  %v35 = vld [vmem:[%s1 + $0x30] sm:$0xf]
  %v36 = vld [vmem:[%s1 + $0x34] sm:$0xf]
  %v37 = vld [vmem:[%s1 + $0x38] sm:$0xf]
  %v38 = vld [vmem:[%s1 + $0x3c] sm:$0xf]
  %v39 = vld [vmem:[%s2] sm:$0x1]
  %v41 = vlaneseq
  %v42 = vshrl.u32 %v41, 7
  %v43 = vsub.s32 0, %v42
  %v44 = vrot.slane %v39, %v43
  %v48 = vunpack.c.l.b16 %v21
  %v49 = vunpack.c.l.b16 %v22
  %v50 = vpack.c.b16 %v49, %v48
  %v68 = vunpack.c.l.b16 %v23
  %v69 = vunpack.c.l.b16 %v24
  %v70 = vunpack.c.l.b16 %v25
  %v71 = vunpack.c.l.b16 %v26
  %v72 = vunpack.c.l.b16 %v27
  %v73 = vunpack.c.l.b16 %v28
  %v74 = vunpack.c.l.b16 %v29
  %v75 = vunpack.c.l.b16 %v30
  %v76 = vunpack.c.l.b16 %v31
  %v77 = vunpack.c.l.b16 %v32
  %v78 = vunpack.c.l.b16 %v33
  %v79 = vunpack.c.l.b16 %v34
  %v80 = vunpack.c.l.b16 %v35
  %v81 = vunpack.c.l.b16 %v36
  %v82 = vunpack.c.l.b16 %v37
  %v83 = vunpack.c.l.b16 %v38
  %v84 = vpack.c.b16 %v69, %v68
  %v85 = vpack.c.b16 %v71, %v70
  %v86 = vpack.c.b16 %v73, %v72
  %v87 = vpack.c.b16 %v75, %v74
  %v88 = vpack.c.b16 %v77, %v76
  %v89 = vpack.c.b16 %v79, %v78
  %v90 = vpack.c.b16 %v81, %v80
  %v91 = vpack.c.b16 %v83, %v82
  %100 = vmatprep.subr.bf16.mxu0 0
  %101 = vmatpush1.bf16.msra.mxu0 %v91
  %102 = vmatprep.subr.bf16.mxu0 0
  %103 = vmatpush1.bf16.msra.mxu0 %v90
  %104 = vmatprep.subr.bf16.mxu0 0
  %105 = vmatpush1.bf16.msra.mxu0 %v89
  %106 = vmatprep.subr.bf16.mxu0 0
  %107 = vmatpush1.bf16.msra.mxu0 %v88
  %108 = vmatprep.subr.bf16.mxu0 0
  %109 = vmatpush1.bf16.msra.mxu0 %v87
  %110 = vmatprep.subr.bf16.mxu0 0
  %111 = vmatpush1.bf16.msra.mxu0 %v86
  %112 = vmatprep.subr.bf16.mxu0 0
  %113 = vmatpush1.bf16.msra.mxu0 %v85
  %114 = vmatprep.subr.bf16.mxu0 0
  %115 = vmatpush1.bf16.msra.mxu0 %v84
  %116 = vmatprep.subr.bf16.mxu0 0
  %117 = vmatpush2.bf16.msra.mxu0 0
  %118 = vmatprep.subr.bf16.mxu0 0
  %119 = vmatpush2.bf16.msra.mxu0 0
  %120 = vmatprep.subr.bf16.mxu0 0
  %121 = vmatpush2.bf16.msra.mxu0 0
  %122 = vmatprep.subr.bf16.mxu0 0
  %123 = vmatpush2.bf16.msra.mxu0 0
  %124 = vmatprep.subr.bf16.mxu0 0
  %125 = vmatpush2.bf16.msra.mxu0 0
  %126 = vmatprep.subr.bf16.mxu0 0
  %127 = vmatpush2.bf16.msra.mxu0 0
  %128 = vmatprep.subr.bf16.mxu0 0
  %129 = vmatpush2.bf16.msra.mxu0 0
  %130 = vmatprep.subr.bf16.mxu0 0
  %131 = vmatpush2.bf16.msra.mxu0 0
  %132 = vmatprep.mubr.bf16.mxu0 0
  %133 = vmatmul.mubr.bf16.gmra.mxu0 %v50
  %v134 = vpop.f32.mrf.mxu0
  %v135 = vadd.f32 %v44, %v134
  %v136 = vpop.f32.mrf.mxu0
  %v137 = vpop.f32.mrf.mxu0
  %v138 = vadd.f32 %v44, %v137
  %v139 = vpop.f32.mrf.mxu0
  %140 = vdwg.mxu0
  %v141 = vmul.f32 %v135, 0.5
  %v142 = vmul.f32 %v138, 0.5
  %v143 = vmul.f32 %v135, 0.70710677
  %v144 = vmul.f32 %v138, 0.70710677
  %v145 = verf.f32.pop %v143
  %v146 = verf.f32.pop %v144
  %v147 = vadd.f32 %v145, 1.0
  %v148 = vadd.f32 %v146, 1.0
  %v149 = vmul.f32 %v141, %v147
  %v150 = vmul.f32 %v142, %v148
  %v151 = vpack.c.bf16 %v150, %v149
  %v152 = vld [vmem:[%s3] sm:$0xf]
  %v153 = vld [vmem:[%s3 + $0x4] sm:$0xf]
  %v154 = vld [vmem:[%s3 + $0x8] sm:$0xf]
  %v155 = vld [vmem:[%s3 + $0xc] sm:$0xf]
  %v156 = vld [vmem:[%s3 + $0x10] sm:$0xf]
  %v157 = vld [vmem:[%s3 + $0x14] sm:$0xf]
  %v158 = vld [vmem:[%s3 + $0x18] sm:$0xf]
  %v159 = vld [vmem:[%s3 + $0x1c] sm:$0xf]
  %v160 = vld [vmem:[%s3 + $0x20] sm:$0xf]
  %v161 = vld [vmem:[%s3 + $0x24] sm:$0xf]
  %v162 = vld [vmem:[%s3 + $0x28] sm:$0xf]
  %v163 = vld [vmem:[%s3 + $0x2c] sm:$0xf]
  %v164 = vld [vmem:[%s3 + $0x30] sm:$0xf]
  %v165 = vld [vmem:[%s3 + $0x34] sm:$0xf]
  %v166 = vld [vmem:[%s3 + $0x38] sm:$0xf]
  %v167 = vld [vmem:[%s3 + $0x3c] sm:$0xf]
  %v168 = vld [vmem:[%s4] sm:$0x1]
  %v170 = vlaneseq
  %v171 = vshrl.u32 %v170, 7
  %v172 = vsub.s32 0, %v171
  %v173 = vrot.slane %v168, %v172
  %v191 = vunpack.c.l.b16 %v152
  %v192 = vunpack.c.l.b16 %v153
  %v193 = vunpack.c.l.b16 %v154
  %v194 = vunpack.c.l.b16 %v155
  %v195 = vunpack.c.l.b16 %v156
  %v196 = vunpack.c.l.b16 %v157
  %v197 = vunpack.c.l.b16 %v158
  %v198 = vunpack.c.l.b16 %v159
  %v199 = vunpack.c.l.b16 %v160
  %v200 = vunpack.c.l.b16 %v161
  %v201 = vunpack.c.l.b16 %v162
  %v202 = vunpack.c.l.b16 %v163
  %v203 = vunpack.c.l.b16 %v164
  %v204 = vunpack.c.l.b16 %v165
  %v205 = vunpack.c.l.b16 %v166
  %v206 = vunpack.c.l.b16 %v167
  %v207 = vpack.c.b16 %v192, %v191
  %v208 = vpack.c.b16 %v194, %v193
  %v209 = vpack.c.b16 %v196, %v195
  %v210 = vpack.c.b16 %v198, %v197
  %v211 = vpack.c.b16 %v200, %v199
  %v212 = vpack.c.b16 %v202, %v201
  %v213 = vpack.c.b16 %v204, %v203
  %v214 = vpack.c.b16 %v206, %v205
  %223 = vmatprep.subr.bf16.mxu0 0
  %224 = vmatpush1.bf16.msra.mxu0 %v214
  %225 = vmatprep.subr.bf16.mxu0 0
  %226 = vmatpush1.bf16.msra.mxu0 %v213
  %227 = vmatprep.subr.bf16.mxu0 0
  %228 = vmatpush1.bf16.msra.mxu0 %v212
  %229 = vmatprep.subr.bf16.mxu0 0
  %230 = vmatpush1.bf16.msra.mxu0 %v211
  %231 = vmatprep.subr.bf16.mxu0 0
  %232 = vmatpush1.bf16.msra.mxu0 %v210
  %233 = vmatprep.subr.bf16.mxu0 0
  %234 = vmatpush1.bf16.msra.mxu0 %v209
  %235 = vmatprep.subr.bf16.mxu0 0
  %236 = vmatpush1.bf16.msra.mxu0 %v208
  %237 = vmatprep.subr.bf16.mxu0 0
  %238 = vmatpush1.bf16.msra.mxu0 %v207
  %239 = vmatprep.subr.bf16.mxu0 0
  %240 = vmatpush2.bf16.msra.mxu0 0
  %241 = vmatprep.subr.bf16.mxu0 0
  %242 = vmatpush2.bf16.msra.mxu0 0
  %243 = vmatprep.subr.bf16.mxu0 0
  %244 = vmatpush2.bf16.msra.mxu0 0
  %245 = vmatprep.subr.bf16.mxu0 0
  %246 = vmatpush2.bf16.msra.mxu0 0
  %247 = vmatprep.subr.bf16.mxu0 0
  %248 = vmatpush2.bf16.msra.mxu0 0
  %249 = vmatprep.subr.bf16.mxu0 0
  %250 = vmatpush2.bf16.msra.mxu0 0
  %251 = vmatprep.subr.bf16.mxu0 0
  %252 = vmatpush2.bf16.msra.mxu0 0
  %253 = vmatprep.subr.bf16.mxu0 0
  %254 = vmatpush2.bf16.msra.mxu0 0
  %255 = vmatprep.mubr.bf16.mxu0 0
  %256 = vmatmul.mubr.bf16.gmra.mxu0 %v151
  %v257 = vpop.f32.mrf.mxu0
  %v258 = vadd.f32 %v173, %v257
  %v259 = vpop.f32.mrf.mxu0
  %v260 = vpop.f32.mrf.mxu0
  %v261 = vadd.f32 %v173, %v260
  %v262 = vpop.f32.mrf.mxu0
  %263 = vdwg.mxu0
  %264 = vst [vmem:[%s5] sm:$0xff] %v258
  %265 = vst [vmem:[%s5 + $0x8] sm:$0xff] %v261
  // Predicated region
  $region22: #{position_wise_ffn.1} parent=0 // pred_check
    _
  $region23: #{position_wise_ffn.1} parent=0 // pred_check_branch
    %267 = sbr.rel (0) target = $region25
  $region24: #{position_wise_ffn.1} parent=0 // pred_region
    _
  $region25: #{position_wise_ffn.1} parent=0 // pred_fallthru
    _
  // Predicated region
  $region26: #{position_wise_ffn.1} parent=0 // pred_check
    _
  $region27: #{position_wise_ffn.1} parent=0 // pred_check_branch
    %269 = sbr.rel (0) target = $region29
  $region28: #{position_wise_ffn.1} parent=0 // pred_region
    _
  $region29: #{position_wise_ffn.1} parent=0 // pred_fallthru
    _

</llo_original>
